<compile_context>
chip_gen: v5e
topology: v5e:2x2
jax: 0.10.0
libtpu: 0.0.40
codegen_flags: <defaults>
</compile_context>

<pallas_src>
from functools import partial

import jax
import jax.numpy as jnp
from jax.experimental import pallas as pl
from jax.experimental.pallas import tpu as pltpu


def _softplus_stable(x):
    # softplus(x) = log1p(exp(-|x|)) + max(x, 0)  (numerically stable, f32)
    return jnp.log1p(jnp.exp(-jnp.abs(x))) + jnp.maximum(x, 0.0)


def _ppo_sample_kernel(s_ref, w_ref, b_ref, eps_ref, out_ref):
    """Sample-only path: writes the (1, B, A) sample and nothing else."""
    a_dim = out_ref.shape[-1]
    # Single fused matmul: [mu | sigma] = s @ [2*W_mu | W_sigma] + [b_mu | b_sig]
    z = jnp.dot(s_ref[...], w_ref[...],
                preferred_element_type=jnp.float32) + b_ref[...]     # (B, 2A)
    mu = z[:, :a_dim]
    std = _softplus_stable(z[:, a_dim:])
    out_ref[0] = mu + std * eps_ref[0]                               # (B, A)


def _ppo_sample_aux_kernel(s_ref, w_ref, b_ref, eps_ref, fused_ref):
    """Aux path: one fused (B, 3A) output = [sample | mu | std]."""
    a_dim = fused_ref.shape[-1] // 3
    z = jnp.dot(s_ref[...], w_ref[...],
                preferred_element_type=jnp.float32) + b_ref[...]     # (B, 2A)
    mu = z[:, :a_dim]
    std = _softplus_stable(z[:, a_dim:])
    sample = mu + std * eps_ref[0]
    fused_ref[...] = jnp.concatenate([sample, mu, std], axis=-1)     # (B, 3A)


def fuse_ppo_actor_params(w_mu, b_mu, w_sigma, b_sigma):
    """Fold the 2x input scale into W_mu and concatenate the two Linears.

    w_*: (H, A) (transpose of PyTorch's nn.Linear weight), b_*: (1, A).
    Returns w_cat: (H, 2A), b_cat: (1, 2A). Do this once at parameter-prep time.
    """
    w_cat = jnp.concatenate([2.0 * w_mu, w_sigma], axis=1)
    b_cat = jnp.concatenate([b_mu, b_sigma], axis=1)
    return w_cat, b_cat


@partial(jax.jit, static_argnames=("return_aux",))
def ppo_actor_out_forward(s, w_cat, b_cat, key, return_aux=False):
    """s: (B, H); w_cat: (H, 2A); b_cat: (1, 2A); key: jax PRNG key.

    Returns the sampled action (1, B, A) (and optionally mu, std for checks).
    """
    B, _ = s.shape
    a_dim = w_cat.shape[1] // 2

    # TODO(synk): in-kernel hardware PRNG (pltpu.prng_*) has no lowering on the
    # sandbox interpret path; eps is drawn here instead (same reparameterized
    # sampling semantics, one extra 256 B input DMA at these shapes).
    eps = jax.random.normal(key, (1, B, a_dim), dtype=jnp.float32)

    vmem = pltpu.MemorySpace.VMEM
    in_specs = [pl.BlockSpec(memory_space=vmem)] * 4

    if not return_aux:
        # Single output DMA; kernel emits the (1, B, A) shape directly.
        return pl.pallas_call(
            _ppo_sample_kernel,
            out_shape=jax.ShapeDtypeStruct((1, B, a_dim), jnp.float32),
            in_specs=in_specs,
            out_specs=pl.BlockSpec(memory_space=vmem),
        )(s, w_cat, b_cat, eps)

    fused = pl.pallas_call(
        _ppo_sample_aux_kernel,
        out_shape=jax.ShapeDtypeStruct((B, 3 * a_dim), jnp.float32),
        in_specs=in_specs,
        out_specs=pl.BlockSpec(memory_space=vmem),
    )(s, w_cat, b_cat, eps)

    sample = fused[:, :a_dim][None, :, :]      # (1, B, A)
    mu = fused[:, a_dim:2 * a_dim]             # (B, A)
    std = fused[:, 2 * a_dim:]                 # (B, A)
    return sample, mu, std


if __name__ == "__main__":
    # Small shapes consistent with the module: batch=8, num_l1_hidden=32, a_dim=8
    B, H, A = 8, 32, 8

    key = jax.random.PRNGKey(0)
    k_s, k_wmu, k_bmu, k_wsig, k_bsig, k_eps = jax.random.split(key, 6)

    # Deterministic parameter init (PyTorch Linear-style uniform bound 1/sqrt(H)).
    bound = 1.0 / jnp.sqrt(jnp.float32(H))
    s = jax.random.normal(k_s, (B, H), dtype=jnp.float32)
    w_mu = jax.random.uniform(k_wmu, (H, A), jnp.float32, -bound, bound)
    b_mu = jax.random.uniform(k_bmu, (1, A), jnp.float32, -bound, bound)
    w_sigma = jax.random.uniform(k_wsig, (H, A), jnp.float32, -bound, bound)
    b_sigma = jax.random.uniform(k_bsig, (1, A), jnp.float32, -bound, bound)

    # One-time parameter prep: fold 2x into W_mu and fuse the two Linears.
    w_cat, b_cat = fuse_ppo_actor_params(w_mu, b_mu, w_sigma, b_sigma)

    # Primary (sample-only) path.
    out = ppo_actor_out_forward(s, w_cat, b_cat, k_eps)
    out = jax.block_until_ready(out)
    assert out.shape == (1, B, A)

    # Aux path for verification (single fused output block in the kernel).
    out_aux, mu_k, std_k = ppo_actor_out_forward(s, w_cat, b_cat, k_eps,
                                                 return_aux=True)
    jax.block_until_ready((out_aux, mu_k, std_k))

    # Reference in plain JAX (high-precision matmul), identical eps stream.
    mu_ref = jnp.dot(2.0 * s, w_mu, precision=jax.lax.Precision.HIGHEST) + b_mu
    sig_ref = jnp.dot(s, w_sigma, precision=jax.lax.Precision.HIGHEST) + b_sigma
    std_ref = jax.nn.softplus(sig_ref)
    eps_ref = jax.random.normal(k_eps, (1, B, A), dtype=jnp.float32)
    samp_ref = mu_ref[None] + std_ref[None] * eps_ref

    assert bool(jnp.allclose(mu_k, mu_ref, atol=1e-5, rtol=1e-5))
    assert bool(jnp.allclose(std_k, std_ref, atol=1e-5, rtol=1e-5))
    assert bool(jnp.all(std_k > 0.0))
    assert bool(jnp.all(jnp.isfinite(out)))
    assert bool(jnp.allclose(out, samp_ref, atol=1e-5, rtol=1e-5))
    assert bool(jnp.allclose(out_aux, out, atol=1e-5, rtol=1e-5))

    # Same key -> identical sample (deterministic eps stream).
    out2 = jax.block_until_ready(ppo_actor_out_forward(s, w_cat, b_cat, k_eps))
    assert bool(jnp.array_equal(out, out2))

    print("KERNEL_OK")
</pallas_src>

<mosaic_0001>
module attributes {stable_mosaic.version = 11 : i64} {
  func.func @_ppo_sample_kernel(%arg0: memref<8x32xf32, #tpu.memory_space<vmem>>, %arg1: memref<32x16xf32, #tpu.memory_space<vmem>>, %arg2: memref<1x16xf32, #tpu.memory_space<vmem>>, %arg3: memref<1x8x8xf32, #tpu.memory_space<vmem>>, %arg4: memref<1x8x8xf32, #tpu.memory_space<vmem>>) attributes {dimension_semantics = [], scalar_prefetch = 0 : i64, scratch_operands = 0 : i64, tpu.core_type = #tpu.core_type<tc>} {
    %c0 = arith.constant 0 : index
    %c0_0 = arith.constant 0 : index
    %0 = vector.load %arg0[%c0, %c0_0] : memref<8x32xf32, #tpu.memory_space<vmem>>, vector<8x32xf32>
    %c0_1 = arith.constant 0 : index
    %c0_2 = arith.constant 0 : index
    %1 = vector.load %arg1[%c0_1, %c0_2] : memref<32x16xf32, #tpu.memory_space<vmem>>, vector<32x16xf32>
    %cst = arith.constant dense<0.000000e+00> : vector<8x16xf32>
    %2 = tpu.matmul %0, %1, %cst {dimension_numbers = #tpu.dot_dimension_numbers<[1], [0], [0], [1], [0, 0, 1, 1], [], []>} : vector<8x32xf32>, vector<32x16xf32>, vector<8x16xf32> -> vector<8x16xf32>
    %c0_3 = arith.constant 0 : index
    %c0_4 = arith.constant 0 : index
    %3 = vector.load %arg2[%c0_3, %c0_4] : memref<1x16xf32, #tpu.memory_space<vmem>>, vector<1x16xf32>
    %4 = vector.broadcast %3 : vector<1x16xf32> to vector<8x16xf32>
    %5 = arith.addf %2, %4 : vector<8x16xf32>
    %6 = vector.extract_strided_slice %5 {offsets = [0, 0], sizes = [8, 8], strides = [1, 1]} : vector<8x16xf32> to vector<8x8xf32>
    %7 = vector.extract_strided_slice %5 {offsets = [0, 8], sizes = [8, 8], strides = [1, 1]} : vector<8x16xf32> to vector<8x8xf32>
    %8 = math.absf %7 : vector<8x8xf32>
    %cst_5 = arith.constant 0.000000e+00 : f32
    %9 = vector.broadcast %cst_5 : f32 to vector<8x8xf32>
    %10 = arith.subf %9, %8 : vector<8x8xf32>
    %11 = math.exp %10 : vector<8x8xf32>
    %12 = math.log1p %11 : vector<8x8xf32>
    %cst_6 = arith.constant 0.000000e+00 : f32
    %13 = vector.broadcast %cst_6 : f32 to vector<8x8xf32>
    %14 = arith.maximumf %7, %13 : vector<8x8xf32>
    %15 = arith.addf %12, %14 : vector<8x8xf32>
    %c0_7 = arith.constant 0 : index
    %c0_8 = arith.constant 0 : index
    %c0_9 = arith.constant 0 : index
    %16 = vector.load %arg3[%c0_7, %c0_8, %c0_9] : memref<1x8x8xf32, #tpu.memory_space<vmem>>, vector<1x8x8xf32>
    %17 = vector.shape_cast %16 : vector<1x8x8xf32> to vector<8x8xf32>
    %18 = arith.mulf %15, %17 : vector<8x8xf32>
    %19 = arith.addf %6, %18 : vector<8x8xf32>
    %c0_10 = arith.constant 0 : index
    %c0_11 = arith.constant 0 : index
    %c0_12 = arith.constant 0 : index
    %20 = vector.load %arg4[%c0_10, %c0_11, %c0_12] : memref<1x8x8xf32, #tpu.memory_space<vmem>>, vector<1x8x8xf32>
    %21 = vector.shape_cast %20 : vector<1x8x8xf32> to vector<8x8xf32>
    %22 = vector.shape_cast %19 : vector<8x8xf32> to vector<1x8x8xf32>
    tpu.vector_store %arg4[%c0_10, %c0_11, %c0_12], %22 {strides = array<i32>} : memref<1x8x8xf32, #tpu.memory_space<vmem>>, vector<1x8x8xf32>,
    return
  }
}

</mosaic_0001>

<llo_original>
// kernel: ppo_actor_out_forward.1
$region0: #{ppo_actor_out_forward.1}
  #allocation0 [shape = 'u32[]', space=smem, size = 0x4, offset = 0x4, fixed_abs, tag = 'smem constant byte address 0x4 - core index']
  #allocation1 [shape = 'u32[72,128]{1,0:T(1,128)}', space=vmem, size = 0x9000, scoped, tag = 'internal scratch']
  %s0 = inlined_call_operand.vmem [shape: f32[8,32], index: 0, kind: input, shape index: {}]
  %s1 = inlined_call_operand.vmem [shape: f32[32,16], index: 1, kind: input, shape index: {}]
  %s2 = inlined_call_operand.vmem [shape: f32[1,16], index: 2, kind: input, shape index: {}]
  %s3 = inlined_call_operand.vmem [shape: f32[1,8,8], index: 3, kind: input, shape index: {}]
  %s4 = inlined_call_operand.hbm [shape: f32[1,8,8], index: 4, kind: output, shape index: {}]
  %s5 = sld [smem:[#allocation0]]
  $region26: #{ppo_actor_out_forward.1} parent=0
    _
  %s7 = ssub.s32 1, %s5
  %s8 = scalar_select 0, %s7, %s5
  $region1: #{ppo_actor_out_forward.1} parent=0
    #allocation2 [shape = 'u8[4096]{0}', space=vmem, size = 0x1000, scoped, tag = 'output window, operand 0, single buffered']
    #allocation3 [shape = 's32[1]{0}', space=sflag, size = 0x4, scoped, tag = 'scoped memory for ppo_actor_out_forward.1']
    %9 = vsyncpa [#allocation3], 0
    // Predicated region
    $region2: #{ppo_actor_out_forward.1} parent=1 // pred_check
      _
    $region3: #{ppo_actor_out_forward.1} parent=1 // pred_check_branch
      %11 = sbr.rel (0) target = $region5
    $region4: #{ppo_actor_out_forward.1} parent=1 // pred_region
      _
    $region5: #{ppo_actor_out_forward.1} parent=1 // pred_fallthru
      _
    // Predicated region
    $region6: #{ppo_actor_out_forward.1} parent=1 // pred_check
      _
    $region7: #{ppo_actor_out_forward.1} parent=1 // pred_check_branch
      %13 = sbr.rel (0) target = $region9
    $region8: #{ppo_actor_out_forward.1} parent=1 // pred_region
      _
    $region9: #{ppo_actor_out_forward.1} parent=1 // pred_fallthru
      _
    // Predicated region
    $region10: #{ppo_actor_out_forward.1} parent=1 // pred_check
      _
    $region11: #{ppo_actor_out_forward.1} parent=1 // pred_check_branch
      %15 = sbr.rel (0) target = $region13
    $region12: #{ppo_actor_out_forward.1} parent=1 // pred_region
      _
    $region13: #{ppo_actor_out_forward.1} parent=1 // pred_fallthru
      _
    // Predicated region
    $region14: #{ppo_actor_out_forward.1} parent=1 // pred_check
      _
    $region15: #{ppo_actor_out_forward.1} parent=1 // pred_check_branch
      %17 = sbr.rel (0) target = $region17
    $region16: #{ppo_actor_out_forward.1} parent=1 // pred_region
      _
    $region17: #{ppo_actor_out_forward.1} parent=1 // pred_fallthru
      _
    %v18 = vld [vmem:[%s0] sm:$0xff]
    %v19 = vld [vmem:[%s1] sm:$0xff]
    %v20 = vld [vmem:[%s1 + $0x8] sm:$0xff]
    %v21 = vld [vmem:[%s1 + $0x10] sm:$0xff]
    %v22 = vld [vmem:[%s1 + $0x18] sm:$0xff]
    %v23 = vld [vmem:[%s2] sm:$0x1]
    %v25 = vperm.slane %v23, 0
    %vm27 = vcmask 261120
    %v29 = vsel %vm27, %v18, 0
    %31 = vmatpush.msra.mxu0 0.0
    %32 = vmatpush.msra.mxu0 0.0
    %33 = vmatpush.msra.mxu0 0.0
    %34 = vmatpush.msra.mxu0 0.0
    %35 = vmatpush.msra.mxu0 0.0
    %36 = vmatpush.msra.mxu0 0.0
    %37 = vmatpush.msra.mxu0 0.0
    %38 = vmatpush.msra.mxu0 0.0
    %39 = vmatpush.msra.mxu0 0.0
    %40 = vmatpush.msra.mxu0 0.0
    %41 = vmatpush.msra.mxu0 0.0
    %42 = vmatpush.msra.mxu0 0.0
    %43 = vmatpush.msra.mxu0 %v22
    %44 = vmatpush.msra.mxu0 %v21
    %45 = vmatpush.msra.mxu0 %v20
    %46 = vmatpush.msra.mxu0 %v19
    %47 = vmatmul.f32.gmra.mxu0 %v29
    %v48 = vpop.f32.mrf.mxu0
    %v49 = vadd.f32 %v25, %v48
    %50 = vdwg.mxu0
    %v51 = vand.u32 2147483647, %v49
    %v52 = vsub.f32 0.0, %v51
    %v53 = vmul.f32 %v52, 1.442695
    %v54 = vpow.pop %v53
    %v55 = vadd.f32 %v54, 1.0
    %v56 = vlog2.pop %v55
    %v57 = vmul.f32 %v56, 0.6931472
    %v58 = vmul.f32 -0.5, %v54
    %v59 = vadd.f32 %v58, 1.0
    %v60 = vmul.f32 %v59, %v54
    %v61 = vand.u32 2147483647, %v54
    %vm62 = vcmp.lt.f32.partialorder %v61, 0.0004427343
    %v63 = vsel %vm62, %v60, %v57
    %v64 = vmax.f32 %v49, 0.0
    %v65 = vadd.f32 %v63, %v64
    %v66 = vld [vmem:[%s3] sm:$0xff]
    %68 = vrot.lane.b32.xlu0 %v66, 8
    %v69 = vpop.permute.xlu0 %68
    %v71 = vmul.f32 %v65, %v69
    %73 = vrot.lane.b32.xlu0 %v71, 120
    %v74 = vpop.permute.xlu0 %73
    %v76 = vadd.f32 %v49, %v74
    %vm77 = vcmask 64512
    %78 = vst.msk [vmem:[#allocation2] sm:$0xff] %vm77, %v76
    // Predicated region
    $region18: #{ppo_actor_out_forward.1} parent=1 // pred_check
      _
    $region19: #{ppo_actor_out_forward.1} parent=1 // pred_check_branch
      %80 = sbr.rel (0) target = $region21
    $region20: #{ppo_actor_out_forward.1} parent=1 // pred_region
      %82 = vsyncadd [#allocation3], 0
      %s84 = sshll.u32 [#allocation2], 4
      %s85 = int_to_ptr.vmem [resolvable:$true] %s84
      %s86 = sshll.u32 %s4, 4
      %s87 = int_to_ptr.hbm [resolvable:$true] %s86
      %89 = dma.vmem_to_hbm [thread:$0]  %s85, 128, %s87, [#allocation3]
    $region21: #{ppo_actor_out_forward.1} parent=1 // pred_fallthru
      _
    // Predicated region
    $region22: #{ppo_actor_out_forward.1} parent=1 // pred_check
      _
    $region23: #{ppo_actor_out_forward.1} parent=1 // pred_check_branch
      %91 = sbr.rel (0) target = $region25
    $region24: #{ppo_actor_out_forward.1} parent=1 // pred_region
      %93 = dma.done [#allocation3], 128
    $region25: #{ppo_actor_out_forward.1} parent=1 // pred_fallthru
      _
    %94 = vsyncpa [#allocation3], 1

</llo_original>
